<compile_context>
chip_gen: v7x
topology: tpu7x:2x2x1
jax: 0.10.0
libtpu: 0.0.40
codegen_flags: <defaults>
</compile_context>

<pallas_src>
import functools
import math

import jax
import jax.numpy as jnp
from jax.experimental import pallas as pl
from jax.experimental.pallas import tpu as pltpu


def eca_kernel_size(channel, b=1, gamma=2):
    # Same formula as the PyTorch module.
    k = int(abs((math.log(channel, 2) + b) / gamma))
    return k if k % 2 else k + 1


def _eca_fused_kernel(w_ref, x_ref, o_ref, *, k, pad, inv_hw):
    # w_ref: SMEM (k,) conv taps (f32).
    # x_ref / o_ref: (Nb, C, HWp) VMEM blocks in the activation dtype.
    nb, c, hwp = x_ref.shape

    # Banded conv matrix: band[o, i] = w[i - o + pad] if |i - o| <= pad else 0.
    # Built once per step from SMEM scalars; zero padding of the 1-D conv is implicit.
    row = jax.lax.broadcasted_iota(jnp.int32, (c, c), 0)
    col = jax.lax.broadcasted_iota(jnp.int32, (c, c), 1)
    diff = col - row
    band = jnp.zeros((c, c), jnp.float32)
    for j in range(k):
        band = band + jnp.where(diff == (j - pad), w_ref[j], 0.0)

    chunk = 2048  # lanes per GAP partial sum; starts stay 128-aligned
    for n in range(nb):
        # --- Global average pool: f32 accumulation without a full-tile f32 copy ---
        gap = jnp.zeros((c, 1), jnp.float32)
        for s0 in range(0, hwp, chunk):
            s1 = min(s0 + chunk, hwp)
            gap = gap + jnp.sum(
                x_ref[n, :, s0:s1].astype(jnp.float32), axis=-1, keepdims=True)
        gap = gap * inv_hw                                     # (C, 1)

        # --- k-tap channel conv (bias=False) on the MXU ---
        s = jnp.dot(band, gap, preferred_element_type=jnp.float32)  # (C, 1)

        # --- sigmoid (EUP) and rescale in the activation dtype; single store ---
        scale = jax.nn.sigmoid(s).astype(o_ref.dtype)          # (C, 1)
        o_ref[n] = x_ref[n] * scale


def eca_block_forward(x, w1d, *, block_budget_bytes=12 * 1024 * 1024):
    """x: (N, C, H, W), w1d: (k,) Conv1d weight. NCHW in / NCHW out."""
    N, C, H, W = x.shape
    k = int(w1d.shape[0])
    pad = (k - 1) // 2
    HW = H * W

    # Lane-dense spatial view; pad H*W to a multiple of 128 only when needed.
    HWp = ((HW + 127) // 128) * 128
    x3 = x.reshape(N, C, HW)
    if HWp != HW:
        x3 = jnp.pad(x3, ((0, 0), (0, 0), (0, HWp - HW)))

    # Batch packing: amortize grid-step overhead, keep >=2 steps when N>=2
    # (v7x megacore), keep each block within the VMEM budget.
    bytes_per_batch = C * HWp * x.dtype.itemsize
    nb_budget = max(1, block_budget_bytes // max(bytes_per_batch, 1))
    nb_cores = N // 2 if N >= 2 else 1
    Nb = max(1, min(nb_budget, nb_cores))
    while N % Nb:
        Nb -= 1
    steps = N // Nb

    block_bytes = Nb * bytes_per_batch
    vmem_limit = int(min(max(4 * block_bytes + C * C * 4 + (8 << 20), 32 << 20),
                         128 * 1024 * 1024))

    out = pl.pallas_call(
        functools.partial(_eca_fused_kernel, k=k, pad=pad, inv_hw=1.0 / HW),
        out_shape=jax.ShapeDtypeStruct((N, C, HWp), x.dtype),
        grid=(steps,),
        in_specs=[
            pl.BlockSpec(memory_space=pltpu.MemorySpace.SMEM),       # (k,) conv taps
            pl.BlockSpec((Nb, C, HWp), lambda i: (i, 0, 0)),
        ],
        out_specs=pl.BlockSpec((Nb, C, HWp), lambda i: (i, 0, 0)),
        compiler_params=pltpu.CompilerParams(
            dimension_semantics=("parallel",),
            vmem_limit_bytes=vmem_limit,
        ),
    )(w1d.astype(jnp.float32), x3)

    if HWp != HW:
        out = out[:, :, :HW]
    return out.reshape(N, C, H, W)


def eca_block_ref(x, w1d):
    """Pure-JAX reference matching the PyTorch module semantics (NCHW)."""
    N, C, H, W = x.shape
    k = int(w1d.shape[0])
    pad = (k - 1) // 2
    gap = jnp.mean(x, axis=(2, 3))                            # (N, C)
    gp = jnp.pad(gap, ((0, 0), (pad, pad)))
    s = sum(w1d[j] * gp[:, j:j + C] for j in range(k))        # Conv1d, bias=False
    return x * jax.nn.sigmoid(s)[:, :, None, None]


if __name__ == "__main__":
    key = jax.random.PRNGKey(0)
    B, C, H, W = 2, 64, 16, 16          # H*W = 256 -> lane-dense, no padding needed
    k = eca_kernel_size(C)              # == 3 for C=64

    kx, kw = jax.random.split(key)
    x = jax.random.normal(kx, (B, C, H, W), jnp.float32)
    w1d = jax.random.normal(kw, (k,), jnp.float32) / math.sqrt(k)

    out = eca_block_forward(x, w1d)
    jax.block_until_ready(out)

    ref = eca_block_ref(x, w1d)
    assert out.shape == (B, C, H, W)
    assert jnp.allclose(out, ref, rtol=1e-4, atol=1e-5), float(jnp.max(jnp.abs(out - ref)))
    print("KERNEL_OK")
</pallas_src>

<mosaic_0001>
module attributes {stable_mosaic.version = 11 : i64} {
  func.func @_eca_fused_kernel(%arg0: i32, %arg1: memref<3xf32, #tpu.memory_space<smem>>, %arg2: memref<1x64x256xf32, #tpu.memory_space<vmem>>, %arg3: memref<1x64x256xf32, #tpu.memory_space<vmem>>) attributes {dimension_semantics = [#tpu.dimension_semantics<parallel>], iteration_bounds = array<i64: 2>, scalar_prefetch = 0 : i64, scratch_operands = 0 : i64, tpu.core_type = #tpu.core_type<tc>, window_params = [{transform_indices = @transform_0, window_bounds = array<i64: 3>}, {transform_indices = @transform_1, window_bounds = array<i64: 1, 64, 256>}, {transform_indices = @transform_2, window_bounds = array<i64: 1, 64, 256>}]} {
    %0 = tpu.iota {dimensions = array<i32: 0>} : vector<64x64xi32>
    %1 = tpu.iota {dimensions = array<i32: 1>} : vector<64x64xi32>
    %2 = arith.subi %1, %0 : vector<64x64xi32>
    %cst = arith.constant 0.000000e+00 : f32
    %3 = vector.broadcast %cst : f32 to vector<64x64xf32>
    %c-1_i32 = arith.constant -1 : i32
    %4 = vector.broadcast %c-1_i32 : i32 to vector<64x64xi32>
    %5 = arith.cmpi eq, %2, %4 : vector<64x64xi32>
    %c0 = arith.constant 0 : index
    %6 = memref.load %arg1[%c0] : memref<3xf32, #tpu.memory_space<smem>>
    %cst_0 = arith.constant 0.000000e+00 : f32
    %7 = vector.broadcast %6 : f32 to vector<64x64xf32>
    %8 = vector.broadcast %cst_0 : f32 to vector<64x64xf32>
    %9 = arith.select %5, %7, %8 : vector<64x64xi1>, vector<64x64xf32>
    %10 = arith.addf %3, %9 : vector<64x64xf32>
    %c0_i32 = arith.constant 0 : i32
    %11 = vector.broadcast %c0_i32 : i32 to vector<64x64xi32>
    %12 = arith.cmpi eq, %2, %11 : vector<64x64xi32>
    %c1 = arith.constant 1 : index
    %13 = memref.load %arg1[%c1] : memref<3xf32, #tpu.memory_space<smem>>
    %cst_1 = arith.constant 0.000000e+00 : f32
    %14 = vector.broadcast %13 : f32 to vector<64x64xf32>
    %15 = vector.broadcast %cst_1 : f32 to vector<64x64xf32>
    %16 = arith.select %12, %14, %15 : vector<64x64xi1>, vector<64x64xf32>
    %17 = arith.addf %10, %16 : vector<64x64xf32>
    %c1_i32 = arith.constant 1 : i32
    %18 = vector.broadcast %c1_i32 : i32 to vector<64x64xi32>
    %19 = arith.cmpi eq, %2, %18 : vector<64x64xi32>
    %c2 = arith.constant 2 : index
    %20 = memref.load %arg1[%c2] : memref<3xf32, #tpu.memory_space<smem>>
    %cst_2 = arith.constant 0.000000e+00 : f32
    %21 = vector.broadcast %20 : f32 to vector<64x64xf32>
    %22 = vector.broadcast %cst_2 : f32 to vector<64x64xf32>
    %23 = arith.select %19, %21, %22 : vector<64x64xi1>, vector<64x64xf32>
    %24 = arith.addf %17, %23 : vector<64x64xf32>
    %cst_3 = arith.constant 0.000000e+00 : f32
    %25 = vector.broadcast %cst_3 : f32 to vector<64x1xf32>
    %c0_4 = arith.constant 0 : index
    %c0_5 = arith.constant 0 : index
    %c0_6 = arith.constant 0 : index
    %26 = vector.load %arg2[%c0_4, %c0_5, %c0_6] : memref<1x64x256xf32, #tpu.memory_space<vmem>>, vector<1x64x256xf32>
    %27 = vector.shape_cast %26 : vector<1x64x256xf32> to vector<64x256xf32>
    %cst_7 = arith.constant dense<0.000000e+00> : vector<64xf32>
    %28 = vector.multi_reduction <add>, %27, %cst_7 [1] : vector<64x256xf32> to vector<64xf32>
    %29 = vector.shape_cast %28 : vector<64xf32> to vector<64x1xf32>
    %30 = arith.addf %25, %29 : vector<64x1xf32>
    %cst_8 = arith.constant 3.906250e-03 : f32
    %31 = vector.broadcast %cst_8 : f32 to vector<64x1xf32>
    %32 = arith.mulf %30, %31 : vector<64x1xf32>
    %cst_9 = arith.constant dense<0.000000e+00> : vector<64x1xf32>
    %33 = tpu.matmul %24, %32, %cst_9 {dimension_numbers = #tpu.dot_dimension_numbers<[1], [0], [0], [1], [0, 0, 1, 1], [], []>} : vector<64x64xf32>, vector<64x1xf32>, vector<64x1xf32> -> vector<64x1xf32>
    %34 = arith.negf %33 : vector<64x1xf32>
    %35 = math.exp %34 : vector<64x1xf32>
    %cst_10 = arith.constant 1.000000e+00 : f32
    %36 = vector.broadcast %cst_10 : f32 to vector<64x1xf32>
    %37 = arith.addf %36, %35 : vector<64x1xf32>
    %38 = arith.divf %36, %37 : vector<64x1xf32>
    %c0_11 = arith.constant 0 : index
    %c0_12 = arith.constant 0 : index
    %c0_13 = arith.constant 0 : index
    %39 = vector.load %arg2[%c0_11, %c0_12, %c0_13] : memref<1x64x256xf32, #tpu.memory_space<vmem>>, vector<1x64x256xf32>
    %40 = vector.shape_cast %39 : vector<1x64x256xf32> to vector<64x256xf32>
    %41 = vector.broadcast %38 : vector<64x1xf32> to vector<64x256xf32>
    %42 = arith.mulf %40, %41 : vector<64x256xf32>
    %c0_14 = arith.constant 0 : index
    %c0_15 = arith.constant 0 : index
    %c0_16 = arith.constant 0 : index
    %43 = vector.load %arg3[%c0_14, %c0_15, %c0_16] : memref<1x64x256xf32, #tpu.memory_space<vmem>>, vector<1x64x256xf32>
    %44 = vector.shape_cast %43 : vector<1x64x256xf32> to vector<64x256xf32>
    %45 = vector.shape_cast %42 : vector<64x256xf32> to vector<1x64x256xf32>
    tpu.vector_store %arg3[%c0_14, %c0_15, %c0_16], %45 {strides = array<i32>} : memref<1x64x256xf32, #tpu.memory_space<vmem>>, vector<1x64x256xf32>,
    return
  }
  func.func @transform_0(%arg0: i32) -> i32 {
    %c0_i32 = arith.constant 0 : i32
    %c0_i32_0 = arith.constant 0 : i32
    return %c0_i32 : i32
  }
  func.func @transform_1(%arg0: i32) -> (i32, i32, i32) {
    %c0_i32 = arith.constant 0 : i32
    %c0_i32_0 = arith.constant 0 : i32
    %c0_i32_1 = arith.constant 0 : i32
    return %arg0, %c0_i32, %c0_i32_0 : i32, i32, i32
  }
  func.func @transform_2(%arg0: i32) -> (i32, i32, i32) {
    %c0_i32 = arith.constant 0 : i32
    %c0_i32_0 = arith.constant 0 : i32
    %c0_i32_1 = arith.constant 0 : i32
    return %arg0, %c0_i32, %c0_i32_0 : i32, i32, i32
  }
}

</mosaic_0001>

<llo_original>
// kernel: tpu_custom_call.1
$region0: #{tpu_custom_call.1}
  #allocation0 [shape = 'u32[]', space=smem, size = 0x4, offset = 0x4, fixed_abs, tag = 'smem constant byte address 0x4 - core index']
  #allocation1 [shape = 'u32[144,128]{1,0:T(1,128)}', space=vmem, size = 0x12000, scoped, tag = 'internal scratch']
  %s0 = inlined_call_operand.hbm [shape: f32[3], index: 0, kind: input, shape index: {}]
  %s1 = inlined_call_operand.hbm [shape: f32[2,64,256], index: 1, kind: input, shape index: {}]
  %s2 = inlined_call_operand.hbm [shape: f32[2,64,256], index: 2, kind: output, shape index: {}]
  %s3 = sld [smem:[#allocation0]]
  $region49: #{tpu_custom_call.1} parent=0
    _
  %s5 = ssub.s32 1, %s3
  %s6 = scalar_select 0, %s5, %s3
  $region1: #{tpu_custom_call.1} parent=0
    #allocation2 [shape = 'u8[512]{0}', space=smem, size = 0x200, scoped, tag = 'input window, operand 0, single buffered']
    #allocation3 [shape = 's32[2]{0}', space=sflag, size = 0x8, scoped, tag = 'scoped memory for tpu_custom_call.1']
    #allocation4 [shape = 's32[2]{0}', space=sflag, size = 0x8, scoped, tag = 'scoped memory for tpu_custom_call.1']
    #allocation5 [shape = 's32[2]{0}', space=sflag, size = 0x8, scoped, tag = 'scoped memory for tpu_custom_call.1']
    #allocation6 [shape = 'u8[131072]{0}', space=vmem, size = 0x20000, scoped, tag = 'input window, operand 1']
    #allocation7 [shape = 'u8[131072]{0}', space=vmem, size = 0x20000, scoped, tag = 'output window, operand 0']
    %7 = vsyncpa [#allocation5], 0
    %8 = vsyncpa [#allocation3], 0
    %s9 = scalar_lea.sflag [#allocation3], 1
    %10 = vsyncpa %s9, 0
    %11 = vsyncpa [#allocation4], 0
    %s12 = scalar_lea.sflag [#allocation4], 1
    %13 = vsyncpa %s12, 0
    loop: start=0, step=1, limit=4
    $region2: #{tpu_custom_call.1} parent=1 // loop_pre_header
      _
    $region3: #{tpu_custom_call.1} parent=1 // loop_header
      %s15 = sphi 0, %s19
      %p16 = scmp.ge.s32.totalorder %s15, 4
      %s23 = sphi 0, %s23
      %s25 = sphi 0, %s23
      %s26 = sphi 0, %s25
      %s40 = sphi 0, %s26
      %s46 = sphi 0, %s48
      %s49 = sphi 0, %s46
      %s50 = sphi 0, %s49
      %s66 = sphi 0, %s50
      %s72 = sphi 0, %s74
      %s75 = sphi 0, %s72
      %s76 = sphi 0, %s75
      %s92 = sphi 0, %s76
    $region4: #{tpu_custom_call.1} parent=1 // loop_header_branch
      %18 = sbr.rel (%p16) target = $region8
    $region5: #{tpu_custom_call.1} parent=1 // loop_body
      %s20 = ssub.s32 %s15, 1
      %s21 = ssub.s32 %s15, 2
      %s22 = sadd.s32 %s15, 1
      %s24 = sadd.s32 %s23, 1
      %p27 = scmp.eq.s32.totalorder %s15, 1
      %p28 = scmp.ne.s32.totalorder %s23, %s25
      %p29 = scmp.eq.s32.totalorder %s15, 0
      %p30 = por %p28, %p29
      %p31 = scmp.ne.s32.totalorder %s23, %s25
      %p32 = scmp.eq.s32.totalorder %s20, 1
      %p33 = por %p31, %p32
      %p34 = scmp.ne.s32.totalorder %s25, %s26
      %p35 = scmp.eq.s32.totalorder %s20, 0
      %p36 = por %p34, %p35
      %p37 = scmp.ne.s32.totalorder %s25, %s26
      %p38 = scmp.eq.s32.totalorder %s21, 1
      %p39 = por %p37, %p38
      %p41 = scmp.ne.s32.totalorder %s26, %s40
      %p42 = scmp.eq.s32.totalorder %s21, 0
      %p43 = por %p41, %p42
      %s44 = ssub.s32 %s15, %s22
      %p45 = scmp.eq.s32.totalorder %s44, 0
      %s47 = sadd.s32 %s46, 1
      %s48 = scalar_select %p45, %s46, %s47
      %p51 = pneg %p45
      %p52 = scmp.eq.s32.totalorder %s15, 1
      %p53 = por %p51, %p52
      %p54 = scmp.ne.s32.totalorder %s46, %s49
      %p55 = scmp.eq.s32.totalorder %s15, 0
      %p56 = por %p54, %p55
      %p57 = scmp.ne.s32.totalorder %s46, %s49
      %p58 = scmp.eq.s32.totalorder %s20, 1
      %p59 = por %p57, %p58
      %p60 = scmp.ne.s32.totalorder %s49, %s50
      %p61 = scmp.eq.s32.totalorder %s20, 0
      %p62 = por %p60, %p61
      %p63 = scmp.ne.s32.totalorder %s49, %s50
      %p64 = scmp.eq.s32.totalorder %s21, 1
      %p65 = por %p63, %p64
      %p67 = scmp.ne.s32.totalorder %s50, %s66
      %p68 = scmp.eq.s32.totalorder %s21, 0
      %p69 = por %p67, %p68
      %s70 = ssub.s32 %s15, %s22
      %p71 = scmp.eq.s32.totalorder %s70, 0
      %s73 = sadd.s32 %s72, 1
      %s74 = scalar_select %p71, %s72, %s73
      %p77 = pneg %p71
      %p78 = scmp.eq.s32.totalorder %s15, 1
      %p79 = por %p77, %p78
      %p80 = scmp.ne.s32.totalorder %s72, %s75
      %p81 = scmp.eq.s32.totalorder %s15, 0
      %p82 = por %p80, %p81
      %p83 = scmp.ne.s32.totalorder %s72, %s75
      %p84 = scmp.eq.s32.totalorder %s20, 1
      %p85 = por %p83, %p84
      %p86 = scmp.ne.s32.totalorder %s75, %s76
      %p87 = scmp.eq.s32.totalorder %s20, 0
      %p88 = por %p86, %p87
      %p89 = scmp.ne.s32.totalorder %s75, %s76
      %p90 = scmp.eq.s32.totalorder %s21, 1
      %p91 = por %p89, %p90
      %p93 = scmp.ne.s32.totalorder %s76, %s92
      %p94 = scmp.eq.s32.totalorder %s21, 0
      %p95 = por %p93, %p94
      %p96 = scmp.le.s32.totalorder 1, %s15
      %p97 = scmp.lt.s32.totalorder %s15, 3
      %p98 = pnand %p96, %p97
      %p99 = pneg %p98
      // Predicated region
      $region9: #{tpu_custom_call.1} parent=5 // pred_check
        _
      $region10: #{tpu_custom_call.1} parent=5 // pred_check_branch
        %101 = sbr.rel (%p98) target = $region12
      $region11: #{tpu_custom_call.1} parent=5 // pred_region
        %s102 = ssub.s32 %s15, 1
        // Predicated region
        $region13: #{tpu_custom_call.1} parent=11 // pred_check
          %p103 = pneg %p36
        $region14: #{tpu_custom_call.1} parent=11 // pred_check_branch
          %105 = sbr.rel (%p103) target = $region16
        $region15: #{tpu_custom_call.1} parent=11 // pred_region
          %s107 = ssub.s32 16, 16
          %108 = vsyncadd [#allocation5], %s107
          %111 = dma.hbm_to_smem %s0, 16, [#allocation2], [#allocation5]
        $region16: #{tpu_custom_call.1} parent=11 // pred_fallthru
          _
      $region12: #{tpu_custom_call.1} parent=5 // pred_fallthru
        _
      %p112 = scmp.lt.s32.totalorder %s15, 2
      // Predicated region
      $region17: #{tpu_custom_call.1} parent=5 // pred_check
        %p113 = pneg %p112
      $region18: #{tpu_custom_call.1} parent=5 // pred_check_branch
        %115 = sbr.rel (%p113) target = $region20
      $region19: #{tpu_custom_call.1} parent=5 // pred_region
        // Predicated region
        $region21: #{tpu_custom_call.1} parent=19 // pred_check
          %p116 = pneg %p56
        $region22: #{tpu_custom_call.1} parent=19 // pred_check_branch
          %118 = sbr.rel (%p116) target = $region24
        $region23: #{tpu_custom_call.1} parent=19 // pred_region
          %s119 = sand.u32 %s46, 1
          %s120 = scalar_lea.sflag [#allocation3], %s119
          %s121 = sand.u32 %s46, 1
          %s122 = smul.addr %s121, 128
          %s123 = scalar_lea.vmem [#allocation6], %s122
          %s125 = ssub.s32 2048, 2048
          %126 = vsyncadd %s120, %s125
          %s127 = smul.addr %s15, 16
          %s128 = smul.addr %s127, 128
          %s129 = scalar_lea.hbm %s1, %s128
          %s130 = sshll.u32 %s123, 4
          %s131 = int_to_ptr.vmem [resolvable:$true] %s130
          %136 = dma.hbm_to_vmem [thread:$0]  %s129, 2048, %s131, %s120, 256, 256, 16
        $region24: #{tpu_custom_call.1} parent=19 // pred_fallthru
          _
      $region20: #{tpu_custom_call.1} parent=5 // pred_fallthru
        _
      %p137 = scmp.le.s32.totalorder 1, %s15
      %p138 = scmp.lt.s32.totalorder %s15, 3
      %p139 = pnand %p137, %p138
      %p140 = pneg %p139
      // Predicated region
      $region25: #{tpu_custom_call.1} parent=5 // pred_check
        _
      $region26: #{tpu_custom_call.1} parent=5 // pred_check_branch
        %142 = sbr.rel (%p139) target = $region28
      $region27: #{tpu_custom_call.1} parent=5 // pred_region
        %s143 = ssub.s32 %s15, 1
        // Predicated region
        $region29: #{tpu_custom_call.1} parent=27 // pred_check
          %p144 = pneg %p36
        $region30: #{tpu_custom_call.1} parent=27 // pred_check_branch
          %146 = sbr.rel (%p144) target = $region32
        $region31: #{tpu_custom_call.1} parent=27 // pred_region
          %147 = dma.done [#allocation5], 16
        $region32: #{tpu_custom_call.1} parent=27 // pred_fallthru
          _
        %s148 = sand.u32 %s49, 1
        %s149 = scalar_lea.sflag [#allocation3], %s148
        %s150 = sand.u32 %s49, 1
        %s151 = smul.addr %s150, 128
        %s152 = scalar_lea.vmem [#allocation6], %s151
        // Predicated region
        $region33: #{tpu_custom_call.1} parent=27 // pred_check
          %p153 = pneg %p62
        $region34: #{tpu_custom_call.1} parent=27 // pred_check_branch
          %155 = sbr.rel (%p153) target = $region36
        $region35: #{tpu_custom_call.1} parent=27 // pred_region
          %156 = dma.done %s149, 2048
        $region36: #{tpu_custom_call.1} parent=27 // pred_fallthru
          _
        %157 = sfence
        %p158 = pneg %p36
        %p159 = pneg %p33
        %s160 = sand.u32 %s49, 1
        %s161 = scalar_lea.sflag [#allocation3], %s160
        %s162 = sand.u32 %s49, 1
        %s163 = smul.addr %s162, 128
        %s164 = scalar_lea.vmem [#allocation6], %s163
        %p165 = pneg %p62
        %p166 = pneg %p59
        %p167 = pneg %p88
        %p168 = pneg %p85
        %s169 = sand.u32 %s75, 1
        %s170 = scalar_lea.sflag [#allocation4], %s169
        %s171 = sand.u32 %s75, 1
        %s172 = smul.addr %s171, 128
        %s173 = scalar_lea.vmem [#allocation7], %s172
        %v174 = vlaneseq
        %v175 = vshrl.u32 %v174, 7
        %v176 = vadd.s32 %v175, 8
        %v177 = vadd.s32 %v175, 16
        %v178 = vadd.s32 %v175, 24
        %v179 = vadd.s32 %v175, 32
        %v180 = vadd.s32 %v175, 40
        %v181 = vadd.s32 %v175, 48
        %v182 = vadd.s32 %v175, 56
        %v183 = vlaneseq
        %v184 = vand.u32 %v183, 127
        %v185 = vsub.s32 %v184, %v175
        %v186 = vsub.s32 %v184, %v176
        %v187 = vsub.s32 %v184, %v177
        %v188 = vsub.s32 %v184, %v178
        %v189 = vsub.s32 %v184, %v179
        %v190 = vsub.s32 %v184, %v180
        %v191 = vsub.s32 %v184, %v181
        %v192 = vsub.s32 %v184, %v182
        %vm193 = vcmp.eq.s32.totalorder %v185, 4294967295
        %vm194 = vcmp.eq.s32.totalorder %v186, 4294967295
        %vm195 = vcmp.eq.s32.totalorder %v187, 4294967295
        %vm196 = vcmp.eq.s32.totalorder %v188, 4294967295
        %vm197 = vcmp.eq.s32.totalorder %v189, 4294967295
        %vm198 = vcmp.eq.s32.totalorder %v190, 4294967295
        %vm199 = vcmp.eq.s32.totalorder %v191, 4294967295
        %vm200 = vcmp.eq.s32.totalorder %v192, 4294967295
        %s201 = sld [smem:[#allocation2]]
        %v202 = vstv %s201
        %v203 = vsel %vm193, %v202, 0.0
        %v204 = vsel %vm194, %v202, 0.0
        %v205 = vsel %vm195, %v202, 0.0
        %v206 = vsel %vm196, %v202, 0.0
        %v207 = vsel %vm197, %v202, 0.0
        %v208 = vsel %vm198, %v202, 0.0
        %v209 = vsel %vm199, %v202, 0.0
        %v210 = vsel %vm200, %v202, 0.0
        %v211 = vadd.f32 %v203, 0.0
        %v212 = vadd.f32 %v204, 0.0
        %v213 = vadd.f32 %v205, 0.0
        %v214 = vadd.f32 %v206, 0.0
        %v215 = vadd.f32 %v207, 0.0
        %v216 = vadd.f32 %v208, 0.0
        %v217 = vadd.f32 %v209, 0.0
        %v218 = vadd.f32 %v210, 0.0
        %vm219 = vcmp.eq.s32.totalorder %v185, 0
        %vm220 = vcmp.eq.s32.totalorder %v186, 0
        %vm221 = vcmp.eq.s32.totalorder %v187, 0
        %vm222 = vcmp.eq.s32.totalorder %v188, 0
        %vm223 = vcmp.eq.s32.totalorder %v189, 0
        %vm224 = vcmp.eq.s32.totalorder %v190, 0
        %vm225 = vcmp.eq.s32.totalorder %v191, 0
        %vm226 = vcmp.eq.s32.totalorder %v192, 0
        %s227 = sld [smem:[#allocation2 + $0x1]]
        %v228 = vstv %s227
        %v229 = vsel %vm219, %v228, 0.0
        %v230 = vsel %vm220, %v228, 0.0
        %v231 = vsel %vm221, %v228, 0.0
        %v232 = vsel %vm222, %v228, 0.0
        %v233 = vsel %vm223, %v228, 0.0
        %v234 = vsel %vm224, %v228, 0.0
        %v235 = vsel %vm225, %v228, 0.0
        %v236 = vsel %vm226, %v228, 0.0
        %v237 = vadd.f32 %v211, %v229
        %v238 = vadd.f32 %v212, %v230
        %v239 = vadd.f32 %v213, %v231
        %v240 = vadd.f32 %v214, %v232
        %v241 = vadd.f32 %v215, %v233
        %v242 = vadd.f32 %v216, %v234
        %v243 = vadd.f32 %v217, %v235
        %v244 = vadd.f32 %v218, %v236
        %vm245 = vcmp.eq.s32.totalorder %v185, 1
        %vm246 = vcmp.eq.s32.totalorder %v186, 1
        %vm247 = vcmp.eq.s32.totalorder %v187, 1
        %vm248 = vcmp.eq.s32.totalorder %v188, 1
        %vm249 = vcmp.eq.s32.totalorder %v189, 1
        %vm250 = vcmp.eq.s32.totalorder %v190, 1
        %vm251 = vcmp.eq.s32.totalorder %v191, 1
        %vm252 = vcmp.eq.s32.totalorder %v192, 1
        %s253 = sld [smem:[#allocation2 + $0x2]]
        %v254 = vstv %s253
        %v255 = vsel %vm245, %v254, 0.0
        %v256 = vsel %vm246, %v254, 0.0
        %v257 = vsel %vm247, %v254, 0.0
        %v258 = vsel %vm248, %v254, 0.0
        %v259 = vsel %vm249, %v254, 0.0
        %v260 = vsel %vm250, %v254, 0.0
        %v261 = vsel %vm251, %v254, 0.0
        %v262 = vsel %vm252, %v254, 0.0
        %v263 = vadd.f32 %v237, %v255
        %v264 = vadd.f32 %v238, %v256
        %v265 = vadd.f32 %v239, %v257
        %v266 = vadd.f32 %v240, %v258
        %v267 = vadd.f32 %v241, %v259
        %v268 = vadd.f32 %v242, %v260
        %v269 = vadd.f32 %v243, %v261
        %v270 = vadd.f32 %v244, %v262
        %v271 = vld [vmem:[%s152] sm:$0xff]
        %v272 = vld [vmem:[%s152 + $0x8] sm:$0xff]
        %v273 = vld [vmem:[%s152 + $0x10] sm:$0xff]
        %v274 = vld [vmem:[%s152 + $0x18] sm:$0xff]
        %v275 = vld [vmem:[%s152 + $0x20] sm:$0xff]
        %v276 = vld [vmem:[%s152 + $0x28] sm:$0xff]
        %v277 = vld [vmem:[%s152 + $0x30] sm:$0xff]
        %v278 = vld [vmem:[%s152 + $0x38] sm:$0xff]
        %v279 = vld [vmem:[%s152 + $0x40] sm:$0xff]
        %v280 = vld [vmem:[%s152 + $0x48] sm:$0xff]
        %v281 = vld [vmem:[%s152 + $0x50] sm:$0xff]
        %v282 = vld [vmem:[%s152 + $0x58] sm:$0xff]
        %v283 = vld [vmem:[%s152 + $0x60] sm:$0xff]
        %v284 = vld [vmem:[%s152 + $0x68] sm:$0xff]
        %v285 = vld [vmem:[%s152 + $0x70] sm:$0xff]
        %v286 = vld [vmem:[%s152 + $0x78] sm:$0xff]
        %v287 = vadd.f32 %v271, %v272
        %288 = vadd.xlane.f32.xlu0 %v287
        %v289 = vpop.xlane.xlu0 %288
        %v290 = vadd.f32 %v273, %v274
        %291 = vadd.xlane.f32.xlu0 %v290
        %v292 = vpop.xlane.xlu0 %291
        %v293 = vadd.f32 %v275, %v276
        %294 = vadd.xlane.f32.xlu0 %v293
        %v295 = vpop.xlane.xlu0 %294
        %v296 = vadd.f32 %v277, %v278
        %297 = vadd.xlane.f32.xlu0 %v296
        %v298 = vpop.xlane.xlu0 %297
        %v299 = vadd.f32 %v279, %v280
        %300 = vadd.xlane.f32.xlu0 %v299
        %v301 = vpop.xlane.xlu0 %300
        %v302 = vadd.f32 %v281, %v282
        %303 = vadd.xlane.f32.xlu0 %v302
        %v304 = vpop.xlane.xlu0 %303
        %v305 = vadd.f32 %v283, %v284
        %306 = vadd.xlane.f32.xlu0 %v305
        %v307 = vpop.xlane.xlu0 %306
        %v308 = vadd.f32 %v285, %v286
        %309 = vadd.xlane.f32.xlu0 %v308
        %v310 = vpop.xlane.xlu0 %309
        %v311 = vadd.f32 %v289, 0.0
        %v312 = vadd.f32 %v292, 0.0
        %v313 = vadd.f32 %v295, 0.0
        %v314 = vadd.f32 %v298, 0.0
        %v315 = vadd.f32 %v301, 0.0
        %v316 = vadd.f32 %v304, 0.0
        %v317 = vadd.f32 %v307, 0.0
        %v318 = vadd.f32 %v310, 0.0
        %v319 = vmul.f32 %v311, 0.00390625
        %v320 = vmul.f32 %v312, 0.00390625
        %v321 = vmul.f32 %v313, 0.00390625
        %v322 = vmul.f32 %v314, 0.00390625
        %v323 = vmul.f32 %v315, 0.00390625
        %v324 = vmul.f32 %v316, 0.00390625
        %v325 = vmul.f32 %v317, 0.00390625
        %v326 = vmul.f32 %v318, 0.00390625
        %vm327 = vcmask 523264
        %v329 = vsel %vm327, %v263, 0
        %v332 = vsel %vm327, %v264, 0
        %v335 = vsel %vm327, %v265, 0
        %v338 = vsel %vm327, %v266, 0
        %v341 = vsel %vm327, %v267, 0
        %v344 = vsel %vm327, %v268, 0
        %v347 = vsel %vm327, %v269, 0
        %v350 = vsel %vm327, %v270, 0
        %352 = vmatprep.subr.mxu0 0.0
        %353 = vmatpush1.msra.mxu0 %v319
        %354 = vmatprep.subr.mxu0 0.0
        %355 = vmatpush1.msra.mxu0 %v320
        %356 = vmatprep.subr.mxu0 0.0
        %357 = vmatpush1.msra.mxu0 %v321
        %358 = vmatprep.subr.mxu0 0.0
        %359 = vmatpush1.msra.mxu0 %v322
        %360 = vmatprep.subr.mxu0 0.0
        %361 = vmatpush1.msra.mxu0 %v323
        %362 = vmatprep.subr.mxu0 0.0
        %363 = vmatpush1.msra.mxu0 %v324
        %364 = vmatprep.subr.mxu0 0.0
        %365 = vmatpush1.msra.mxu0 %v325
        %366 = vmatprep.subr.mxu0 0.0
        %367 = vmatpush1.msra.mxu0 %v326
        %368 = vmatprep.subr.mxu0 0.0
        %369 = vmatpush1.msra.mxu0 0.0
        %370 = vmatprep.subr.mxu0 0.0
        %371 = vmatpush1.msra.mxu0 0.0
        %372 = vmatprep.subr.mxu0 0.0
        %373 = vmatpush1.msra.mxu0 0.0
        %374 = vmatprep.subr.mxu0 0.0
        %375 = vmatpush1.msra.mxu0 0.0
        %376 = vmatprep.subr.mxu0 0.0
        %377 = vmatpush1.msra.mxu0 0.0
        %378 = vmatprep.subr.mxu0 0.0
        %379 = vmatpush1.msra.mxu0 0.0
        %380 = vmatprep.subr.mxu0 0.0
        %381 = vmatpush1.msra.mxu0 0.0
        %382 = vmatprep.subr.mxu0 0.0
        %383 = vmatpush1.msra.mxu0 0.0
        %384 = vmatprep.subr.mxu0 0.0
        %385 = vmatpush1.msra.mxu0 0.0
        %386 = vmatprep.subr.mxu0 0.0
        %387 = vmatpush1.msra.mxu0 0.0
        %388 = vmatprep.subr.mxu0 0.0
        %389 = vmatpush1.msra.mxu0 0.0
        %390 = vmatprep.subr.mxu0 0.0
        %391 = vmatpush1.msra.mxu0 0.0
        %392 = vmatprep.subr.mxu0 0.0
        %393 = vmatpush1.msra.mxu0 0.0
        %394 = vmatprep.subr.mxu0 0.0
        %395 = vmatpush1.msra.mxu0 0.0
        %396 = vmatprep.subr.mxu0 0.0
        %397 = vmatpush1.msra.mxu0 0.0
        %398 = vmatprep.subr.mxu0 0.0
        %399 = vmatpush1.msra.mxu0 0.0
        %400 = vmatprep.subr.mxu0 0.0
        %401 = vmatpush1.msra.mxu0 0.0
        %402 = vmatprep.subr.mxu0 0.0
        %403 = vmatpush1.msra.mxu0 0.0
        %404 = vmatprep.subr.mxu0 0.0
        %405 = vmatpush1.msra.mxu0 0.0
        %406 = vmatprep.subr.mxu0 0.0
        %407 = vmatpush1.msra.mxu0 0.0
        %408 = vmatprep.subr.mxu0 0.0
        %409 = vmatpush1.msra.mxu0 0.0
        %410 = vmatprep.subr.mxu0 0.0
        %411 = vmatpush1.msra.mxu0 0.0
        %412 = vmatprep.subr.mxu0 0.0
        %413 = vmatpush1.msra.mxu0 0.0
        %414 = vmatprep.subr.mxu0 0.0
        %415 = vmatpush1.msra.mxu0 0.0
        %416 = vmatprep.mubr.f32.mxu0 0.0
        %417 = vmatmul.mubr.f32.gmra.mrb[0].mxu0 %v329
        %v418 = vpop.f32.mrb[0].mxu0
        %v419 = vadd.f32 0.0, %v418
        %v420 = vpop.f32.mrb[0].mxu0
        %421 = vmatprep.mubr.f32.mxu0 0.0
        %422 = vmatmul.mubr.f32.gmra.mrb[0].mxu0 %v332
        %v423 = vpop.f32.mrb[0].mxu0
        %v424 = vadd.f32 0.0, %v423
        %v425 = vpop.f32.mrb[0].mxu0
        %426 = vmatprep.mubr.f32.mxu0 0.0
        %427 = vmatmul.mubr.f32.gmra.mrb[0].mxu0 %v335
        %v428 = vpop.f32.mrb[0].mxu0
        %v429 = vadd.f32 0.0, %v428
        %v430 = vpop.f32.mrb[0].mxu0
        %431 = vmatprep.mubr.f32.mxu0 0.0
        %432 = vmatmul.mubr.f32.gmra.mrb[0].mxu0 %v338
        %v433 = vpop.f32.mrb[0].mxu0
        %v434 = vadd.f32 0.0, %v433
        %v435 = vpop.f32.mrb[0].mxu0
        %436 = vmatprep.mubr.f32.mxu0 0.0
        %437 = vmatmul.mubr.f32.gmra.mrb[0].mxu0 %v341
        %v438 = vpop.f32.mrb[0].mxu0
        %v439 = vadd.f32 0.0, %v438
        %v440 = vpop.f32.mrb[0].mxu0
        %441 = vmatprep.mubr.f32.mxu0 0.0
        %442 = vmatmul.mubr.f32.gmra.mrb[0].mxu0 %v344
        %v443 = vpop.f32.mrb[0].mxu0
        %v444 = vadd.f32 0.0, %v443
        %v445 = vpop.f32.mrb[0].mxu0
        %446 = vmatprep.mubr.f32.mxu0 0.0
        %447 = vmatmul.mubr.f32.gmra.mrb[0].mxu0 %v347
        %v448 = vpop.f32.mrb[0].mxu0
        %v449 = vadd.f32 0.0, %v448
        %v450 = vpop.f32.mrb[0].mxu0
        %451 = vmatprep.mubr.f32.mxu0 0.0
        %452 = vmatmul.mubr.f32.gmra.mrb[0].mxu0 %v350
        %v453 = vpop.f32.mrb[0].mxu0
        %v454 = vadd.f32 0.0, %v453
        %v455 = vpop.f32.mrb[0].mxu0
        %456 = vdwg.mxu0
        %v457 = vxor.u32 %v419, 2147483648
        %v458 = vxor.u32 %v424, 2147483648
        %v459 = vxor.u32 %v429, 2147483648
        %v460 = vxor.u32 %v434, 2147483648
        %v461 = vxor.u32 %v439, 2147483648
        %v462 = vxor.u32 %v444, 2147483648
        %v463 = vxor.u32 %v449, 2147483648
        %v464 = vxor.u32 %v454, 2147483648
        %v465 = vmul.f32 %v457, 1.442695
        %v466 = vpow.pop %v465
        %v467 = vmul.f32 %v458, 1.442695
        %v468 = vpow.pop %v467
        %v469 = vmul.f32 %v459, 1.442695
        %v470 = vpow.pop %v469
        %v471 = vmul.f32 %v460, 1.442695
        %v472 = vpow.pop %v471
        %v473 = vmul.f32 %v461, 1.442695
        %v474 = vpow.pop %v473
        %v475 = vmul.f32 %v462, 1.442695
        %v476 = vpow.pop %v475
        %v477 = vmul.f32 %v463, 1.442695
        %v478 = vpow.pop %v477
        %v479 = vmul.f32 %v464, 1.442695
        %v480 = vpow.pop %v479
        %v481 = vadd.f32 %v466, 1.0
        %v482 = vadd.f32 %v468, 1.0
        %v483 = vadd.f32 %v470, 1.0
        %v484 = vadd.f32 %v472, 1.0
        %v485 = vadd.f32 %v474, 1.0
        %v486 = vadd.f32 %v476, 1.0
        %v487 = vadd.f32 %v478, 1.0
        %v488 = vadd.f32 %v480, 1.0
        %v489 = vrcp.pop %v481
        %v490 = vmul.f32 1.0, %v489
        %v491 = vrcp.pop %v482
        %v492 = vmul.f32 1.0, %v491
        %v493 = vrcp.pop %v483
        %v494 = vmul.f32 1.0, %v493
        %v495 = vrcp.pop %v484
        %v496 = vmul.f32 1.0, %v495
        %v497 = vrcp.pop %v485
        %v498 = vmul.f32 1.0, %v497
        %v499 = vrcp.pop %v486
        %v500 = vmul.f32 1.0, %v499
        %v501 = vrcp.pop %v487
        %v502 = vmul.f32 1.0, %v501
        %v503 = vrcp.pop %v488
        %v504 = vmul.f32 1.0, %v503
        %506 = vset.pattern.permute.xlu0 0
        %507 = vperm.xlu0 %506, %v490
        %v508 = vpop.permute.xlu0 %507
        %511 = vset.pattern.permute.xlu0 0
        %512 = vperm.xlu0 %511, %v492
        %v513 = vpop.permute.xlu0 %512
        %516 = vset.pattern.permute.xlu0 0
        %517 = vperm.xlu0 %516, %v494
        %v518 = vpop.permute.xlu0 %517
        %521 = vset.pattern.permute.xlu0 0
        %522 = vperm.xlu0 %521, %v496
        %v523 = vpop.permute.xlu0 %522
        %526 = vset.pattern.permute.xlu0 0
        %527 = vperm.xlu0 %526, %v498
        %v528 = vpop.permute.xlu0 %527
        %531 = vset.pattern.permute.xlu0 0
        %532 = vperm.xlu0 %531, %v500
        %v533 = vpop.permute.xlu0 %532
        %536 = vset.pattern.permute.xlu0 0
        %537 = vperm.xlu0 %536, %v502
        %v538 = vpop.permute.xlu0 %537
        %541 = vset.pattern.permute.xlu0 0
        %542 = vperm.xlu0 %541, %v504
        %v543 = vpop.permute.xlu0 %542
        %v545 = vmul.f32 %v271, %v508
        %v546 = vmul.f32 %v272, %v508
        %v547 = vmul.f32 %v273, %v513
        %v548 = vmul.f32 %v274, %v513
        %v549 = vmul.f32 %v275, %v518
        %v550 = vmul.f32 %v276, %v518
        %v551 = vmul.f32 %v277, %v523
        %v552 = vmul.f32 %v278, %v523
        %v553 = vmul.f32 %v279, %v528
        %v554 = vmul.f32 %v280, %v528
        %v555 = vmul.f32 %v281, %v533
        %v556 = vmul.f32 %v282, %v533
        %v557 = vmul.f32 %v283, %v538
        %v558 = vmul.f32 %v284, %v538
        %v559 = vmul.f32 %v285, %v543
        %v560 = vmul.f32 %v286, %v543
        %561 = vst [vmem:[%s173] sm:$0xff] %v545
        %562 = vst [vmem:[%s173 + $0x8] sm:$0xff] %v546
        %563 = vst [vmem:[%s173 + $0x10] sm:$0xff] %v547
        %564 = vst [vmem:[%s173 + $0x18] sm:$0xff] %v548
        %565 = vst [vmem:[%s173 + $0x20] sm:$0xff] %v549
        %566 = vst [vmem:[%s173 + $0x28] sm:$0xff] %v550
        %567 = vst [vmem:[%s173 + $0x30] sm:$0xff] %v551
        %568 = vst [vmem:[%s173 + $0x38] sm:$0xff] %v552
        %569 = vst [vmem:[%s173 + $0x40] sm:$0xff] %v553
        %570 = vst [vmem:[%s173 + $0x48] sm:$0xff] %v554
        %571 = vst [vmem:[%s173 + $0x50] sm:$0xff] %v555
        %572 = vst [vmem:[%s173 + $0x58] sm:$0xff] %v556
        %573 = vst [vmem:[%s173 + $0x60] sm:$0xff] %v557
        %574 = vst [vmem:[%s173 + $0x68] sm:$0xff] %v558
        %575 = vst [vmem:[%s173 + $0x70] sm:$0xff] %v559
        %576 = vst [vmem:[%s173 + $0x78] sm:$0xff] %v560
        %s577 = sand.u32 %s75, 1
        %s578 = scalar_lea.sflag [#allocation4], %s577
        %s579 = sand.u32 %s75, 1
        %s580 = smul.addr %s579, 128
        %s581 = scalar_lea.vmem [#allocation7], %s580
        // Predicated region
        $region37: #{tpu_custom_call.1} parent=27 // pred_check
          %p582 = pneg %p85
        $region38: #{tpu_custom_call.1} parent=27 // pred_check_branch
          %584 = sbr.rel (%p582) target = $region40
        $region39: #{tpu_custom_call.1} parent=27 // pred_region
          %s586 = ssub.s32 2048, 2048
          %587 = vsyncadd %s578, %s586
          %s588 = smul.addr %s20, 16
          %s589 = smul.addr %s588, 128
          %s590 = scalar_lea.hbm %s2, %s589
          %s591 = sshll.u32 %s581, 4
          %s592 = int_to_ptr.vmem [resolvable:$true] %s591
          %597 = dma.vmem_to_hbm [thread:$0]  %s592, 2048, %s590, %s578, 256, 256, 16
        $region40: #{tpu_custom_call.1} parent=27 // pred_fallthru
          _
      $region28: #{tpu_custom_call.1} parent=5 // pred_fallthru
        _
      %p598 = scmp.le.s32.totalorder 2, %s15
      // Predicated region
      $region41: #{tpu_custom_call.1} parent=5 // pred_check
        %p599 = pneg %p598
      $region42: #{tpu_custom_call.1} parent=5 // pred_check_branch
        %601 = sbr.rel (%p599) target = $region44
      $region43: #{tpu_custom_call.1} parent=5 // pred_region
        %s602 = ssub.s32 %s15, 2
        // Predicated region
        $region45: #{tpu_custom_call.1} parent=43 // pred_check
          %p603 = pneg %p91
        $region46: #{tpu_custom_call.1} parent=43 // pred_check_branch
          %605 = sbr.rel (%p603) target = $region48
        $region47: #{tpu_custom_call.1} parent=43 // pred_region
          %s606 = sand.u32 %s76, 1
          %s607 = scalar_lea.sflag [#allocation4], %s606
          %s608 = sand.u32 %s76, 1
          %s609 = smul.addr %s608, 128
          %s610 = scalar_lea.vmem [#allocation7], %s609
          %611 = dma.done %s607, 2048
        $region48: #{tpu_custom_call.1} parent=43 // pred_fallthru
          _
      $region44: #{tpu_custom_call.1} parent=5 // pred_fallthru
        _
    $region6: #{tpu_custom_call.1} parent=1 // loop_footer
      %s19 = sadd.s32 1, %s15
    $region7: #{tpu_custom_call.1} parent=1 // loop_footer_branch
      %14 = sbr.rel target = $region3
    $region8: #{tpu_custom_call.1} parent=1 // loop_exit
      _
    %612 = vsyncpa [#allocation3], 1
    %s613 = scalar_lea.sflag [#allocation3], 1
    %614 = vsyncpa %s613, 1
    %615 = vsyncpa [#allocation4], 1
    %s616 = scalar_lea.sflag [#allocation4], 1
    %617 = vsyncpa %s616, 1
    %618 = vsyncpa [#allocation5], 1
    %s619 = scalar_lea.sflag [#allocation5], 1
    %620 = vsyncpa %s619, 1

</llo_original>
